<compile_context>
chip_gen: v5e
topology: v5e:2x2
jax: 0.10.0
libtpu: 0.0.40
codegen_flags: <defaults>
</compile_context>

<pallas_src>
import functools

import jax
import jax.numpy as jnp
from jax.experimental import pallas as pl
from jax.experimental.pallas import tpu as pltpu

HID = 100          # controller_hid, hard-coded in the PyTorch module
H = 128            # lane-padded hidden size
GATES = 4 * H      # 512
B_PAD = 8          # sublane-padded batch


# ----------------------------------------------------------------------------
# Shared LSTM-cell math (lane-aligned gate slices at 0/128/256/384)
# ----------------------------------------------------------------------------
def _lstm_step(x, h, c, wih, whh, bias):
    gates = (jnp.dot(x, wih, preferred_element_type=jnp.float32)
             + jnp.dot(h, whh, preferred_element_type=jnp.float32)
             + bias)                                    # (B_PAD, 4*128)
    i_g = jax.nn.sigmoid(gates[:, 0 * H:1 * H])
    f_g = jax.nn.sigmoid(gates[:, 1 * H:2 * H])
    g_g = jnp.tanh(gates[:, 2 * H:3 * H])
    o_g = jax.nn.sigmoid(gates[:, 3 * H:4 * H])
    cx = f_g * c + i_g * g_g
    hx = o_g * jnp.tanh(cx)
    return hx, cx


# ----------------------------------------------------------------------------
# Single-step kernel (Controller.forward), decoder head chosen by scalar prefetch
# ----------------------------------------------------------------------------
def _step_kernel(bidx_ref, emb_ref, h_ref, c_ref,
                 wih_ref, whh_ref, bias_ref, wdec_ref, bdec_ref,
                 logits_ref, hx_ref, cx_ref, *, is_train):
    del bidx_ref  # consumed by the index_maps (decoder selection)
    hx, cx = _lstm_step(emb_ref[...], h_ref[...], c_ref[...],
                        wih_ref[...], whh_ref[...], bias_ref[...])
    logits = jnp.dot(hx, wdec_ref[...],
                     preferred_element_type=jnp.float32) + bdec_ref[...]
    if is_train:
        logits = 2.5 * jnp.tanh(logits)       # /5 already folded into dec weights
    logits_ref[...] = logits
    hx_ref[...] = hx
    cx_ref[...] = cx


# ----------------------------------------------------------------------------
# Fused multi-step kernel: weights VMEM-resident, h/c carried in VMEM scratch
# ----------------------------------------------------------------------------
def _fused_kernel(bseq_ref, emb_ref, h0_ref, c0_ref,
                  wih_ref, whh_ref, bias_ref, wdec_ref, bdec_ref,
                  logits_ref, hx_ref, cx_ref, h_scr, c_scr, *, is_train):
    del bseq_ref  # consumed by the index_maps (per-step decoder selection)
    s = pl.program_id(0)

    @pl.when(s == 0)
    def _():
        h_scr[...] = h0_ref[...]
        c_scr[...] = c0_ref[...]

    hx, cx = _lstm_step(emb_ref[...], h_scr[...], c_scr[...],
                        wih_ref[...], whh_ref[...], bias_ref[...])
    logits = jnp.dot(hx, wdec_ref[...],
                     preferred_element_type=jnp.float32) + bdec_ref[...]
    if is_train:
        logits = 2.5 * jnp.tanh(logits)
    logits_ref[...] = logits
    h_scr[...] = hx
    c_scr[...] = cx
    hx_ref[...] = hx
    cx_ref[...] = cx


# ----------------------------------------------------------------------------
# Parameter packing (done once): pad, fold biases and the /5 scale, stack heads
# ----------------------------------------------------------------------------
def _pad2(x, rows, cols):
    x = jnp.asarray(x, jnp.float32)
    out = jnp.zeros((rows, cols), jnp.float32)
    return out.at[: x.shape[0], : x.shape[1]].set(x)


def pack_params(params):
    enc = jnp.asarray(params["encoder"], jnp.float32)          # (vocab, HID)
    encoder_p = jnp.zeros((enc.shape[0], H), jnp.float32).at[:, :HID].set(enc)

    w_ih = jnp.asarray(params["w_ih"], jnp.float32)            # (4*HID, HID)
    w_hh = jnp.asarray(params["w_hh"], jnp.float32)
    b = (jnp.asarray(params["b_ih"], jnp.float32)
         + jnp.asarray(params["b_hh"], jnp.float32))           # folded bias

    w_ih_p = jnp.zeros((H, GATES), jnp.float32)
    w_hh_p = jnp.zeros((H, GATES), jnp.float32)
    bias_p = jnp.zeros((1, GATES), jnp.float32)
    for k in range(4):
        w_ih_p = w_ih_p.at[:HID, k * H:k * H + HID].set(
            w_ih[k * HID:(k + 1) * HID, :].T)
        w_hh_p = w_hh_p.at[:HID, k * H:k * H + HID].set(
            w_hh[k * HID:(k + 1) * HID, :].T)
        bias_p = bias_p.at[0, k * H:k * H + HID].set(b[k * HID:(k + 1) * HID])

    n_blocks = len(params["dec_w"])
    out_dims = []
    dec_w_all = jnp.zeros((n_blocks, H, H), jnp.float32)
    dec_b_all = jnp.zeros((n_blocks, 1, H), jnp.float32)
    for i, (w, bb) in enumerate(zip(params["dec_w"], params["dec_b"])):
        w = jnp.asarray(w, jnp.float32)        # (out_i, HID)
        bb = jnp.asarray(bb, jnp.float32)
        o = int(w.shape[0])
        out_dims.append(o)
        dec_w_all = dec_w_all.at[i, :HID, :o].set(w.T / 5.0)   # fold /5
        dec_b_all = dec_b_all.at[i, 0, :o].set(bb / 5.0)

    return {
        "encoder_p": encoder_p,
        "w_ih_p": w_ih_p, "w_hh_p": w_hh_p, "bias_p": bias_p,
        "dec_w_all": dec_w_all, "dec_b_all": dec_b_all,
        "out_dims": tuple(out_dims),
    }


# ----------------------------------------------------------------------------
# Wrappers
# ----------------------------------------------------------------------------
def controller_forward(inputs, hidden, packed, block_idx, is_embed, is_train=True):
    """One Controller.forward step.  Returns (logits (B,out), (hx, cx) (B,HID))."""
    if not is_embed:
        embed = jnp.take(packed["encoder_p"],
                         jnp.asarray(inputs, jnp.int32), axis=0)
    else:
        embed = jnp.asarray(inputs, jnp.float32)
    B = embed.shape[0]
    emb_p = _pad2(embed, B_PAD, H)
    hx_p = _pad2(hidden[0], B_PAD, H)
    cx_p = _pad2(hidden[1], B_PAD, H)
    bidx = jnp.asarray([block_idx], jnp.int32)

    const = lambda i, b: (0, 0)
    sel3 = lambda i, b: (b[0], 0, 0)
    kernel = functools.partial(_step_kernel, is_train=is_train)

    logits_p, hx_o, cx_o = pl.pallas_call(
        kernel,
        out_shape=(
            jax.ShapeDtypeStruct((B_PAD, H), jnp.float32),
            jax.ShapeDtypeStruct((B_PAD, H), jnp.float32),
            jax.ShapeDtypeStruct((B_PAD, H), jnp.float32),
        ),
        grid_spec=pltpu.PrefetchScalarGridSpec(
            num_scalar_prefetch=1,
            grid=(1,),
            in_specs=[
                pl.BlockSpec((B_PAD, H), const),      # embed
                pl.BlockSpec((B_PAD, H), const),      # hx0
                pl.BlockSpec((B_PAD, H), const),      # cx0
                pl.BlockSpec((H, GATES), const),      # w_ih (pre-transposed, padded)
                pl.BlockSpec((H, GATES), const),      # w_hh
                pl.BlockSpec((1, GATES), const),      # folded bias
                pl.BlockSpec((None, H, H), sel3),     # selected decoder weight
                pl.BlockSpec((None, 1, H), sel3),     # selected decoder bias
            ],
            out_specs=(
                pl.BlockSpec((B_PAD, H), const),
                pl.BlockSpec((B_PAD, H), const),
                pl.BlockSpec((B_PAD, H), const),
            ),
        ),
        compiler_params=pltpu.CompilerParams(dimension_semantics=("arbitrary",)),
    )(bidx, emb_p, hx_p, cx_p,
      packed["w_ih_p"], packed["w_hh_p"], packed["bias_p"],
      packed["dec_w_all"], packed["dec_b_all"])

    out_dim = packed["out_dims"][int(block_idx)]
    return logits_p[:B, :out_dim], (hx_o[:B, :HID], cx_o[:B, :HID])


def controller_rollout_fused(tokens, hidden, packed, block_seq,
                             zero_embed_first=True, is_train=True):
    """All teacher-forced Controller.forward steps in ONE pallas_call.

    tokens    : int32 (S, B)  input token of each step (tokens[0] ignored when
                zero_embed_first, matching sample()'s zero-embed first step).
    hidden    : (hx, cx) each (B, HID) initial state.
    block_seq : length-S sequence of decoder-head indices (python ints).
    Returns   : (list of per-step logits (B, out_dim_s), final (hx, cx)).
    """
    tokens = jnp.asarray(tokens, jnp.int32)
    S, B = tokens.shape
    block_seq = [int(x) for x in block_seq]
    bseq = jnp.asarray(block_seq, jnp.int32)

    emb = jnp.take(packed["encoder_p"], tokens.reshape(-1), axis=0).reshape(S, B, H)
    if zero_embed_first:
        emb = emb.at[0].set(0.0)
    emb_p = jnp.zeros((S, B_PAD, H), jnp.float32).at[:, :B, :].set(emb)
    hx_p = _pad2(hidden[0], B_PAD, H)
    cx_p = _pad2(hidden[1], B_PAD, H)

    step_map = lambda s, b: (s, 0, 0)
    const2 = lambda s, b: (0, 0)
    sel3 = lambda s, b: (b[s], 0, 0)
    kernel = functools.partial(_fused_kernel, is_train=is_train)

    logits_all, hx_o, cx_o = pl.pallas_call(
        kernel,
        out_shape=(
            jax.ShapeDtypeStruct((S, B_PAD, H), jnp.float32),
            jax.ShapeDtypeStruct((B_PAD, H), jnp.float32),
            jax.ShapeDtypeStruct((B_PAD, H), jnp.float32),
        ),
        grid_spec=pltpu.PrefetchScalarGridSpec(
            num_scalar_prefetch=1,
            grid=(S,),
            in_specs=[
                pl.BlockSpec((None, B_PAD, H), step_map),   # per-step embed
                pl.BlockSpec((B_PAD, H), const2),           # hx0
                pl.BlockSpec((B_PAD, H), const2),           # cx0
                pl.BlockSpec((H, GATES), const2),           # w_ih (VMEM-resident)
                pl.BlockSpec((H, GATES), const2),           # w_hh (VMEM-resident)
                pl.BlockSpec((1, GATES), const2),           # bias (VMEM-resident)
                pl.BlockSpec((None, H, H), sel3),           # per-step decoder W
                pl.BlockSpec((None, 1, H), sel3),           # per-step decoder b
            ],
            out_specs=(
                pl.BlockSpec((None, B_PAD, H), step_map),
                pl.BlockSpec((B_PAD, H), const2),
                pl.BlockSpec((B_PAD, H), const2),
            ),
            scratch_shapes=[
                pltpu.VMEM((B_PAD, H), jnp.float32),        # carried h
                pltpu.VMEM((B_PAD, H), jnp.float32),        # carried c
            ],
        ),
        compiler_params=pltpu.CompilerParams(dimension_semantics=("arbitrary",)),
    )(bseq, emb_p, hx_p, cx_p,
      packed["w_ih_p"], packed["w_hh_p"], packed["bias_p"],
      packed["dec_w_all"], packed["dec_b_all"])

    out = [logits_all[s, :B, :packed["out_dims"][block_seq[s]]] for s in range(S)]
    return out, (hx_o[:B, :HID], cx_o[:B, :HID])


# ----------------------------------------------------------------------------
# Deterministic parameter construction (mirrors __init__ / reset_parameters)
# ----------------------------------------------------------------------------
def build_params(key, layers_list, num_of_conv_choices_list):
    init_range = 0.1
    keys = jax.random.split(key, 8)

    def unif(k, shape):
        return jax.random.uniform(k, shape, jnp.float32, -init_range, init_range)

    params = {
        "encoder": unif(keys[0], (max(num_of_conv_choices_list), HID)),
        "w_ih": unif(keys[1], (4 * HID, HID)),
        "w_hh": unif(keys[2], (4 * HID, HID)),
        "b_ih": unif(keys[3], (4 * HID,)),
        "b_hh": unif(keys[4], (4 * HID,)),
        "dec_w": [], "dec_b": [],
    }
    dkey = keys[5]
    for i in range(len(layers_list)):
        for j in range(layers_list[i]):
            dkey, k1, k2 = jax.random.split(dkey, 3)
            params["dec_w"].append(unif(k1, (num_of_conv_choices_list[i], HID)))
            params["dec_b"].append(jnp.zeros((num_of_conv_choices_list[i],), jnp.float32))
            params["dec_w"].append(unif(k2, (j + 1, HID)))
            params["dec_b"].append(jnp.zeros((j + 1,), jnp.float32))
    return params


# ----------------------------------------------------------------------------
# Pure-JAX reference (for correctness check)
# ----------------------------------------------------------------------------
def reference_forward(inputs, hidden, params, block_idx, is_embed, is_train=True):
    embed = (jnp.take(params["encoder"], inputs, axis=0)
             if not is_embed else inputs).astype(jnp.float32)
    hx0, cx0 = hidden
    gates = (embed @ params["w_ih"].T + params["b_ih"]
             + hx0 @ params["w_hh"].T + params["b_hh"])
    i_g = jax.nn.sigmoid(gates[:, 0 * HID:1 * HID])
    f_g = jax.nn.sigmoid(gates[:, 1 * HID:2 * HID])
    g_g = jnp.tanh(gates[:, 2 * HID:3 * HID])
    o_g = jax.nn.sigmoid(gates[:, 3 * HID:4 * HID])
    cx = f_g * cx0 + i_g * g_g
    hx = o_g * jnp.tanh(cx)
    logits = (hx @ params["dec_w"][block_idx].T + params["dec_b"][block_idx]) / 5.0
    if is_train:
        logits = 2.5 * jnp.tanh(logits)
    return logits, (hx, cx)


if __name__ == "__main__":
    key = jax.random.PRNGKey(0)
    layers_list = [2, 2]
    num_choices = [4, 6]
    params = build_params(key, layers_list, num_choices)
    packed = pack_params(params)

    B = 2
    hidden0 = (jnp.zeros((B, HID), jnp.float32), jnp.zeros((B, HID), jnp.float32))

    # --- single-step kernel: step 0 (is_embed=True, zero input, block 0) ----
    inputs0 = jnp.zeros((B, HID), jnp.float32)
    logits0, hidden1 = controller_forward(inputs0, hidden0, packed, 0, True)
    ref0, ref_h1 = reference_forward(inputs0, hidden0, params, 0, True)

    # --- single-step kernel: step 1 (token ids, block 1) --------------------
    inputs1 = jnp.array([0, 1], jnp.int32)
    logits1, hidden2 = controller_forward(inputs1, hidden1, packed, 1, False)
    ref1, ref_h2 = reference_forward(inputs1, ref_h1, params, 1, False)

    # --- fused multi-step rollout over all decoder heads --------------------
    n_blocks = len(params["dec_w"])                 # = 2 * total_layers = 8
    block_seq = list(range(n_blocks))
    tokens = jax.random.randint(jax.random.PRNGKey(1), (n_blocks, B),
                                0, max(num_choices), dtype=jnp.int32)
    fused_logits, fused_hidden = controller_rollout_fused(
        tokens, hidden0, packed, block_seq)

    # teacher-forced reference loop (one reference_forward per step)
    ref_hidden = hidden0
    ref_logits = []
    for s in range(n_blocks):
        if s == 0:
            lg, ref_hidden = reference_forward(jnp.zeros((B, HID), jnp.float32),
                                               ref_hidden, params, s, True)
        else:
            lg, ref_hidden = reference_forward(tokens[s], ref_hidden, params, s, False)
        ref_logits.append(lg)

    jax.block_until_ready((logits0, logits1, hidden2, fused_logits, fused_hidden))

    ATOL = 5e-4
    assert logits0.shape == ref0.shape and jnp.allclose(logits0, ref0, atol=ATOL)
    assert jnp.allclose(hidden1[0], ref_h1[0], atol=ATOL)
    assert jnp.allclose(hidden1[1], ref_h1[1], atol=ATOL)
    assert logits1.shape == ref1.shape and jnp.allclose(logits1, ref1, atol=ATOL)
    assert jnp.allclose(hidden2[0], ref_h2[0], atol=ATOL)
    assert jnp.allclose(hidden2[1], ref_h2[1], atol=ATOL)
    for s in range(n_blocks):
        assert fused_logits[s].shape == ref_logits[s].shape, f"shape mismatch step {s}"
        assert jnp.allclose(fused_logits[s], ref_logits[s], atol=ATOL), f"fused step {s}"
    assert jnp.allclose(fused_hidden[0], ref_hidden[0], atol=ATOL)
    assert jnp.allclose(fused_hidden[1], ref_hidden[1], atol=ATOL)

    print("KERNEL_OK")
</pallas_src>

<mosaic_0001>
module attributes {stable_mosaic.version = 11 : i64} {
  func.func @_step_kernel(%arg0: i32, %arg1: memref<1xi32, #tpu.memory_space<smem>>, %arg2: memref<8x128xf32, #tpu.memory_space<vmem>>, %arg3: memref<8x128xf32, #tpu.memory_space<vmem>>, %arg4: memref<8x128xf32, #tpu.memory_space<vmem>>, %arg5: memref<128x512xf32, #tpu.memory_space<vmem>>, %arg6: memref<128x512xf32, #tpu.memory_space<vmem>>, %arg7: memref<1x512xf32, #tpu.memory_space<vmem>>, %arg8: memref<1x128x128xf32, #tpu.memory_space<vmem>>, %arg9: memref<1x1x128xf32, #tpu.memory_space<vmem>>, %arg10: memref<8x128xf32, #tpu.memory_space<vmem>>, %arg11: memref<8x128xf32, #tpu.memory_space<vmem>>, %arg12: memref<8x128xf32, #tpu.memory_space<vmem>>) attributes {dimension_semantics = [#tpu.dimension_semantics<arbitrary>], iteration_bounds = array<i64: 1>, scalar_prefetch = 1 : i64, scratch_operands = 0 : i64, tpu.core_type = #tpu.core_type<tc>, window_params = [{pipeline_mode = #tpu.pipeline_mode<synchronous>, transform_indices = @transform_0, window_bounds = array<i64: 8, 128>}, {pipeline_mode = #tpu.pipeline_mode<synchronous>, transform_indices = @transform_1, window_bounds = array<i64: 8, 128>}, {pipeline_mode = #tpu.pipeline_mode<synchronous>, transform_indices = @transform_2, window_bounds = array<i64: 8, 128>}, {pipeline_mode = #tpu.pipeline_mode<synchronous>, transform_indices = @transform_3, window_bounds = array<i64: 128, 512>}, {pipeline_mode = #tpu.pipeline_mode<synchronous>, transform_indices = @transform_4, window_bounds = array<i64: 128, 512>}, {pipeline_mode = #tpu.pipeline_mode<synchronous>, transform_indices = @transform_5, window_bounds = array<i64: 1, 512>}, {transform_indices = @transform_6, window_bounds = array<i64: 1, 128, 128>}, {transform_indices = @transform_7, window_bounds = array<i64: 1, 1, 128>}, {pipeline_mode = #tpu.pipeline_mode<synchronous>, transform_indices = @transform_8, window_bounds = array<i64: 8, 128>}, {pipeline_mode = #tpu.pipeline_mode<synchronous>, transform_indices = @transform_9, window_bounds = array<i64: 8, 128>}, {pipeline_mode = #tpu.pipeline_mode<synchronous>, transform_indices = @transform_10, window_bounds = array<i64: 8, 128>}]} {
    %c0 = arith.constant 0 : index
    %c0_0 = arith.constant 0 : index
    %0 = vector.load %arg2[%c0, %c0_0] : memref<8x128xf32, #tpu.memory_space<vmem>>, vector<8x128xf32>
    %c0_1 = arith.constant 0 : index
    %c0_2 = arith.constant 0 : index
    %1 = vector.load %arg3[%c0_1, %c0_2] : memref<8x128xf32, #tpu.memory_space<vmem>>, vector<8x128xf32>
    %c0_3 = arith.constant 0 : index
    %c0_4 = arith.constant 0 : index
    %2 = vector.load %arg4[%c0_3, %c0_4] : memref<8x128xf32, #tpu.memory_space<vmem>>, vector<8x128xf32>
    %c0_5 = arith.constant 0 : index
    %c0_6 = arith.constant 0 : index
    %3 = vector.load %arg5[%c0_5, %c0_6] : memref<128x512xf32, #tpu.memory_space<vmem>>, vector<128x512xf32>
    %c0_7 = arith.constant 0 : index
    %c0_8 = arith.constant 0 : index
    %4 = vector.load %arg6[%c0_7, %c0_8] : memref<128x512xf32, #tpu.memory_space<vmem>>, vector<128x512xf32>
    %c0_9 = arith.constant 0 : index
    %c0_10 = arith.constant 0 : index
    %5 = vector.load %arg7[%c0_9, %c0_10] : memref<1x512xf32, #tpu.memory_space<vmem>>, vector<1x512xf32>
    %cst = arith.constant dense<0.000000e+00> : vector<8x512xf32>
    %6 = tpu.matmul %0, %3, %cst {dimension_numbers = #tpu.dot_dimension_numbers<[1], [0], [0], [1], [0, 0, 1, 1], [], []>} : vector<8x128xf32>, vector<128x512xf32>, vector<8x512xf32> -> vector<8x512xf32>
    %cst_11 = arith.constant dense<0.000000e+00> : vector<8x512xf32>
    %7 = tpu.matmul %1, %4, %cst_11 {dimension_numbers = #tpu.dot_dimension_numbers<[1], [0], [0], [1], [0, 0, 1, 1], [], []>} : vector<8x128xf32>, vector<128x512xf32>, vector<8x512xf32> -> vector<8x512xf32>
    %8 = arith.addf %6, %7 : vector<8x512xf32>
    %9 = vector.broadcast %5 : vector<1x512xf32> to vector<8x512xf32>
    %10 = arith.addf %8, %9 : vector<8x512xf32>
    %11 = vector.extract_strided_slice %10 {offsets = [0, 0], sizes = [8, 128], strides = [1, 1]} : vector<8x512xf32> to vector<8x128xf32>
    %12 = arith.negf %11 : vector<8x128xf32>
    %13 = math.exp %12 : vector<8x128xf32>
    %cst_12 = arith.constant 1.000000e+00 : f32
    %14 = vector.broadcast %cst_12 : f32 to vector<8x128xf32>
    %15 = arith.addf %14, %13 : vector<8x128xf32>
    %16 = arith.divf %14, %15 : vector<8x128xf32>
    %17 = vector.extract_strided_slice %10 {offsets = [0, 128], sizes = [8, 128], strides = [1, 1]} : vector<8x512xf32> to vector<8x128xf32>
    %18 = arith.negf %17 : vector<8x128xf32>
    %19 = math.exp %18 : vector<8x128xf32>
    %cst_13 = arith.constant 1.000000e+00 : f32
    %20 = vector.broadcast %cst_13 : f32 to vector<8x128xf32>
    %21 = arith.addf %20, %19 : vector<8x128xf32>
    %22 = arith.divf %20, %21 : vector<8x128xf32>
    %23 = vector.extract_strided_slice %10 {offsets = [0, 256], sizes = [8, 128], strides = [1, 1]} : vector<8x512xf32> to vector<8x128xf32>
    %24 = math.tanh %23 : vector<8x128xf32>
    %25 = vector.extract_strided_slice %10 {offsets = [0, 384], sizes = [8, 128], strides = [1, 1]} : vector<8x512xf32> to vector<8x128xf32>
    %26 = arith.negf %25 : vector<8x128xf32>
    %27 = math.exp %26 : vector<8x128xf32>
    %cst_14 = arith.constant 1.000000e+00 : f32
    %28 = vector.broadcast %cst_14 : f32 to vector<8x128xf32>
    %29 = arith.addf %28, %27 : vector<8x128xf32>
    %30 = arith.divf %28, %29 : vector<8x128xf32>
    %31 = arith.mulf %22, %2 : vector<8x128xf32>
    %32 = arith.mulf %16, %24 : vector<8x128xf32>
    %33 = arith.addf %31, %32 : vector<8x128xf32>
    %34 = math.tanh %33 : vector<8x128xf32>
    %35 = arith.mulf %30, %34 : vector<8x128xf32>
    %c0_15 = arith.constant 0 : index
    %c0_16 = arith.constant 0 : index
    %c0_17 = arith.constant 0 : index
    %36 = vector.load %arg8[%c0_15, %c0_16, %c0_17] : memref<1x128x128xf32, #tpu.memory_space<vmem>>, vector<1x128x128xf32>
    %37 = vector.shape_cast %36 : vector<1x128x128xf32> to vector<128x128xf32>
    %cst_18 = arith.constant dense<0.000000e+00> : vector<8x128xf32>
    %38 = tpu.matmul %35, %37, %cst_18 {dimension_numbers = #tpu.dot_dimension_numbers<[1], [0], [0], [1], [0, 0, 1, 1], [], []>} : vector<8x128xf32>, vector<128x128xf32>, vector<8x128xf32> -> vector<8x128xf32>
    %c0_19 = arith.constant 0 : index
    %c0_20 = arith.constant 0 : index
    %c0_21 = arith.constant 0 : index
    %39 = vector.load %arg9[%c0_19, %c0_20, %c0_21] : memref<1x1x128xf32, #tpu.memory_space<vmem>>, vector<1x1x128xf32>
    %40 = vector.shape_cast %39 : vector<1x1x128xf32> to vector<1x128xf32>
    %41 = vector.broadcast %40 : vector<1x128xf32> to vector<8x128xf32>
    %42 = arith.addf %38, %41 : vector<8x128xf32>
    %43 = math.tanh %42 : vector<8x128xf32>
    %cst_22 = arith.constant 2.500000e+00 : f32
    %44 = vector.broadcast %cst_22 : f32 to vector<8x128xf32>
    %45 = arith.mulf %44, %43 : vector<8x128xf32>
    %c0_23 = arith.constant 0 : index
    %c0_24 = arith.constant 0 : index
    %46 = vector.load %arg10[%c0_23, %c0_24] : memref<8x128xf32, #tpu.memory_space<vmem>>, vector<8x128xf32>
    tpu.vector_store %arg10[%c0_23, %c0_24], %45 {strides = array<i32>} : memref<8x128xf32, #tpu.memory_space<vmem>>, vector<8x128xf32>,
    %c0_25 = arith.constant 0 : index
    %c0_26 = arith.constant 0 : index
    %47 = vector.load %arg11[%c0_25, %c0_26] : memref<8x128xf32, #tpu.memory_space<vmem>>, vector<8x128xf32>
    tpu.vector_store %arg11[%c0_25, %c0_26], %35 {strides = array<i32>} : memref<8x128xf32, #tpu.memory_space<vmem>>, vector<8x128xf32>,
    %c0_27 = arith.constant 0 : index
    %c0_28 = arith.constant 0 : index
    %48 = vector.load %arg12[%c0_27, %c0_28] : memref<8x128xf32, #tpu.memory_space<vmem>>, vector<8x128xf32>
    tpu.vector_store %arg12[%c0_27, %c0_28], %33 {strides = array<i32>} : memref<8x128xf32, #tpu.memory_space<vmem>>, vector<8x128xf32>,
    return
  }
  func.func @transform_0(%arg0: i32, %arg1: memref<1xi32, #tpu.memory_space<smem>>) -> (i32, i32) {
    %c0_i32 = arith.constant 0 : i32
    %c0_i32_0 = arith.constant 0 : i32
    %c0_i32_1 = arith.constant 0 : i32
    return %c0_i32, %c0_i32_0 : i32, i32
  }
  func.func @transform_1(%arg0: i32, %arg1: memref<1xi32, #tpu.memory_space<smem>>) -> (i32, i32) {
    %c0_i32 = arith.constant 0 : i32
    %c0_i32_0 = arith.constant 0 : i32
    %c0_i32_1 = arith.constant 0 : i32
    return %c0_i32, %c0_i32_0 : i32, i32
  }
  func.func @transform_2(%arg0: i32, %arg1: memref<1xi32, #tpu.memory_space<smem>>) -> (i32, i32) {
    %c0_i32 = arith.constant 0 : i32
    %c0_i32_0 = arith.constant 0 : i32
    %c0_i32_1 = arith.constant 0 : i32
    return %c0_i32, %c0_i32_0 : i32, i32
  }
  func.func @transform_3(%arg0: i32, %arg1: memref<1xi32, #tpu.memory_space<smem>>) -> (i32, i32) {
    %c0_i32 = arith.constant 0 : i32
    %c0_i32_0 = arith.constant 0 : i32
    %c0_i32_1 = arith.constant 0 : i32
    return %c0_i32, %c0_i32_0 : i32, i32
  }
  func.func @transform_4(%arg0: i32, %arg1: memref<1xi32, #tpu.memory_space<smem>>) -> (i32, i32) {
    %c0_i32 = arith.constant 0 : i32
    %c0_i32_0 = arith.constant 0 : i32
    %c0_i32_1 = arith.constant 0 : i32
    return %c0_i32, %c0_i32_0 : i32, i32
  }
  func.func @transform_5(%arg0: i32, %arg1: memref<1xi32, #tpu.memory_space<smem>>) -> (i32, i32) {
    %c0_i32 = arith.constant 0 : i32
    %c0_i32_0 = arith.constant 0 : i32
    %c0_i32_1 = arith.constant 0 : i32
    return %c0_i32, %c0_i32_0 : i32, i32
  }
  func.func @transform_6(%arg0: i32, %arg1: memref<1xi32, #tpu.memory_space<smem>>) -> (i32, i32, i32) {
    %c0 = arith.constant 0 : index
    %0 = memref.load %arg1[%c0] : memref<1xi32, #tpu.memory_space<smem>>
    %c0_i32 = arith.constant 0 : i32
    %c0_i32_0 = arith.constant 0 : i32
    %c0_i32_1 = arith.constant 0 : i32
    return %0, %c0_i32, %c0_i32_0 : i32, i32, i32
  }
  func.func @transform_7(%arg0: i32, %arg1: memref<1xi32, #tpu.memory_space<smem>>) -> (i32, i32, i32) {
    %c0 = arith.constant 0 : index
    %0 = memref.load %arg1[%c0] : memref<1xi32, #tpu.memory_space<smem>>
    %c0_i32 = arith.constant 0 : i32
    %c0_i32_0 = arith.constant 0 : i32
    %c0_i32_1 = arith.constant 0 : i32
    return %0, %c0_i32, %c0_i32_0 : i32, i32, i32
  }
  func.func @transform_8(%arg0: i32, %arg1: memref<1xi32, #tpu.memory_space<smem>>) -> (i32, i32) {
    %c0_i32 = arith.constant 0 : i32
    %c0_i32_0 = arith.constant 0 : i32
    %c0_i32_1 = arith.constant 0 : i32
    return %c0_i32, %c0_i32_0 : i32, i32
  }
  func.func @transform_9(%arg0: i32, %arg1: memref<1xi32, #tpu.memory_space<smem>>) -> (i32, i32) {
    %c0_i32 = arith.constant 0 : i32
    %c0_i32_0 = arith.constant 0 : i32
    %c0_i32_1 = arith.constant 0 : i32
    return %c0_i32, %c0_i32_0 : i32, i32
  }
  func.func @transform_10(%arg0: i32, %arg1: memref<1xi32, #tpu.memory_space<smem>>) -> (i32, i32) {
    %c0_i32 = arith.constant 0 : i32
    %c0_i32_0 = arith.constant 0 : i32
    %c0_i32_1 = arith.constant 0 : i32
    return %c0_i32, %c0_i32_0 : i32, i32
  }
}

</mosaic_0001>

<llo_original>
// kernel: tpu_custom_call.1
$region0: #{tpu_custom_call.1}
  #allocation0 [shape = 'u32[]', space=smem, size = 0x4, offset = 0x4, fixed_abs, tag = 'smem constant byte address 0x4 - core index']
  #allocation1 [shape = 'u32[72,128]{1,0:T(1,128)}', space=vmem, size = 0x9000, scoped, tag = 'internal scratch']
  #allocation2 [shape = 's32[1]{0}', space=sflag, size = 0x4, scoped, tag = 'scoped memory for tpu_custom_call.1']
  #allocation3 [shape = 's32[1]{0:T(128)S(6)}', space=smem, size = 0x200, scoped, tag = 'prefetched SMEM operand 0']
  %s0 = inlined_call_operand.<no memory space> [shape: s32[1], index: 0, kind: input, shape index: {}]
  %s1 = inlined_call_operand.hbm [shape: f32[8,128], index: 1, kind: input, shape index: {}]
  %s2 = inlined_call_operand.hbm [shape: f32[8,128], index: 2, kind: input, shape index: {}]
  %s3 = inlined_call_operand.hbm [shape: f32[8,128], index: 3, kind: input, shape index: {}]
  %s4 = inlined_call_operand.hbm [shape: f32[128,512], index: 4, kind: input, shape index: {}]
  %s5 = inlined_call_operand.hbm [shape: f32[128,512], index: 5, kind: input, shape index: {}]
  %s6 = inlined_call_operand.hbm [shape: f32[1,512], index: 6, kind: input, shape index: {}]
  %s7 = inlined_call_operand.hbm [shape: f32[8,128,128], index: 7, kind: input, shape index: {}]
  %s8 = inlined_call_operand.vmem [shape: f32[8,1,128], index: 8, kind: input, shape index: {}]
  %s9 = inlined_call_operand.hbm [shape: f32[8,128], index: 9, kind: output, shape index: {0}]
  %s10 = inlined_call_operand.hbm [shape: f32[8,128], index: 10, kind: output, shape index: {1}]
  %s11 = inlined_call_operand.hbm [shape: f32[8,128], index: 11, kind: output, shape index: {2}]
  %12 = xla_tuple %s9, %s10, %s11
  %s13 = sld [smem:[#allocation0]]
  $region86: #{tpu_custom_call.1} parent=0
    _
  %s15 = ssub.s32 1, %s13
  %s16 = scalar_select 0, %s15, %s13
  %17 = sst [smem:[#allocation3]] %s0
  $region1: #{tpu_custom_call.1} parent=0
    #allocation4 [shape = 'u8[4096]{0}', space=vmem, size = 0x1000, scoped, tag = 'input window, operand 1, single buffered']
    #allocation5 [shape = 's32[1]{0}', space=sflag, size = 0x4, scoped, tag = 'scoped memory for tpu_custom_call.1']
    #allocation6 [shape = 's32[1]{0}', space=sflag, size = 0x4, scoped, tag = 'scoped memory for tpu_custom_call.1']
    #allocation7 [shape = 'u8[4096]{0}', space=vmem, size = 0x1000, scoped, tag = 'input window, operand 2, single buffered']
    #allocation8 [shape = 's32[1]{0}', space=sflag, size = 0x4, scoped, tag = 'scoped memory for tpu_custom_call.1']
    #allocation9 [shape = 'u8[4096]{0}', space=vmem, size = 0x1000, scoped, tag = 'input window, operand 3, single buffered']
    #allocation10 [shape = 'u8[262144]{0}', space=vmem, size = 0x40000, scoped, tag = 'input window, operand 4, single buffered']
    #allocation11 [shape = 's32[1]{0}', space=sflag, size = 0x4, scoped, tag = 'scoped memory for tpu_custom_call.1']
    #allocation12 [shape = 'u8[262144]{0}', space=vmem, size = 0x40000, scoped, tag = 'input window, operand 5, single buffered']
    #allocation13 [shape = 'u8[2048]{0}', space=vmem, size = 0x800, scoped, tag = 'input window, operand 6, single buffered']
    #allocation14 [shape = 's32[1]{0}', space=sflag, size = 0x4, scoped, tag = 'scoped memory for tpu_custom_call.1']
    #allocation15 [shape = 'u8[65536]{0}', space=vmem, size = 0x10000, scoped, tag = 'input window, operand 7, single buffered']
    #allocation16 [shape = 'u8[4096]{0}', space=vmem, size = 0x1000, scoped, tag = 'output window, operand 0, single buffered']
    #allocation17 [shape = 'u8[4096]{0}', space=vmem, size = 0x1000, scoped, tag = 'output window, operand 1, single buffered']
    #allocation18 [shape = 's32[1]{0}', space=sflag, size = 0x4, scoped, tag = 'scoped memory for tpu_custom_call.1']
    #allocation19 [shape = 'u8[4096]{0}', space=vmem, size = 0x1000, scoped, tag = 'output window, operand 2, single buffered']
    %18 = vsyncpa [#allocation5], 0
    %19 = vsyncpa [#allocation8], 0
    %20 = vsyncpa [#allocation11], 0
    %21 = vsyncpa [#allocation14], 0
    %22 = vsyncpa [#allocation6], 0
    %23 = vsyncpa [#allocation18], 0
    // Predicated region
    $region2: #{tpu_custom_call.1} parent=1 // pred_check
      _
    $region3: #{tpu_custom_call.1} parent=1 // pred_check_branch
      %25 = sbr.rel (0) target = $region5
    $region4: #{tpu_custom_call.1} parent=1 // pred_region
      %27 = vsyncadd [#allocation5], 0
      %s29 = sshll.u32 %s1, 4
      %s30 = int_to_ptr.hbm [resolvable:$true] %s29
      %s31 = sshll.u32 [#allocation4], 4
      %s32 = int_to_ptr.vmem [resolvable:$true] %s31
      %34 = dma.hbm_to_vmem [thread:$0]  %s30, 128, %s32, [#allocation5]
    $region5: #{tpu_custom_call.1} parent=1 // pred_fallthru
      _
    // Predicated region
    $region6: #{tpu_custom_call.1} parent=1 // pred_check
      _
    $region7: #{tpu_custom_call.1} parent=1 // pred_check_branch
      %36 = sbr.rel (0) target = $region9
    $region8: #{tpu_custom_call.1} parent=1 // pred_region
      %38 = vsyncadd [#allocation8], 0
      %s40 = sshll.u32 %s2, 4
      %s41 = int_to_ptr.hbm [resolvable:$true] %s40
      %s42 = sshll.u32 [#allocation7], 4
      %s43 = int_to_ptr.vmem [resolvable:$true] %s42
      %45 = dma.hbm_to_vmem [thread:$0]  %s41, 128, %s43, [#allocation8]
    $region9: #{tpu_custom_call.1} parent=1 // pred_fallthru
      _
    // Predicated region
    $region10: #{tpu_custom_call.1} parent=1 // pred_check
      _
    $region11: #{tpu_custom_call.1} parent=1 // pred_check_branch
      %47 = sbr.rel (0) target = $region13
    $region12: #{tpu_custom_call.1} parent=1 // pred_region
      %49 = vsyncadd [#allocation8], 0
      %s51 = sshll.u32 %s3, 4
      %s52 = int_to_ptr.hbm [resolvable:$true] %s51
      %s53 = sshll.u32 [#allocation9], 4
      %s54 = int_to_ptr.vmem [resolvable:$true] %s53
      %56 = dma.hbm_to_vmem [thread:$0]  %s52, 128, %s54, [#allocation8]
    $region13: #{tpu_custom_call.1} parent=1 // pred_fallthru
      _
    // Predicated region
    $region14: #{tpu_custom_call.1} parent=1 // pred_check
      _
    $region15: #{tpu_custom_call.1} parent=1 // pred_check_branch
      %58 = sbr.rel (0) target = $region17
    $region16: #{tpu_custom_call.1} parent=1 // pred_region
      %60 = vsyncadd [#allocation11], 0
      %s61 = sshll.u32 %s4, 4
      %s62 = int_to_ptr.hbm [resolvable:$true] %s61
      %s63 = sshll.u32 [#allocation10], 4
      %s64 = int_to_ptr.vmem [resolvable:$true] %s63
      %69 = dma.hbm_to_vmem [thread:$0]  %s62, 8192, %s64, [#allocation11], 512, 512, 32
    $region17: #{tpu_custom_call.1} parent=1 // pred_fallthru
      _
    // Predicated region
    $region18: #{tpu_custom_call.1} parent=1 // pred_check
      _
    $region19: #{tpu_custom_call.1} parent=1 // pred_check_branch
      %71 = sbr.rel (0) target = $region21
    $region20: #{tpu_custom_call.1} parent=1 // pred_region
      %73 = vsyncadd [#allocation11], 0
      %s74 = sshll.u32 %s5, 4
      %s75 = int_to_ptr.hbm [resolvable:$true] %s74
      %s76 = sshll.u32 [#allocation12], 4
      %s77 = int_to_ptr.vmem [resolvable:$true] %s76
      %82 = dma.hbm_to_vmem [thread:$0]  %s75, 8192, %s77, [#allocation11], 512, 512, 32
    $region21: #{tpu_custom_call.1} parent=1 // pred_fallthru
      _
    // Predicated region
    $region22: #{tpu_custom_call.1} parent=1 // pred_check
      _
    $region23: #{tpu_custom_call.1} parent=1 // pred_check_branch
      %84 = sbr.rel (0) target = $region25
    $region24: #{tpu_custom_call.1} parent=1 // pred_region
      %86 = vsyncadd [#allocation14], 0
      %s88 = sshll.u32 %s6, 4
      %s89 = int_to_ptr.hbm [resolvable:$true] %s88
      %s90 = sshll.u32 [#allocation13], 4
      %s91 = int_to_ptr.vmem [resolvable:$true] %s90
      %93 = dma.hbm_to_vmem [thread:$0]  %s89, 64, %s91, [#allocation14]
    $region25: #{tpu_custom_call.1} parent=1 // pred_fallthru
      _
    // Predicated region
    $region26: #{tpu_custom_call.1} parent=1 // pred_check
      _
    $region27: #{tpu_custom_call.1} parent=1 // pred_check_branch
      %95 = sbr.rel (0) target = $region29
    $region28: #{tpu_custom_call.1} parent=1 // pred_region
      %s96 = sld [smem:[#allocation3]]
      %98 = vsyncadd [#allocation14], 0
      %s99 = smul.addr %s96, 16
      %s100 = smul.addr %s99, 8
      %s101 = scalar_lea.hbm %s7, %s100
      %s102 = sshll.u32 %s101, 4
      %s103 = int_to_ptr.hbm [resolvable:$true] %s102
      %s104 = sshll.u32 [#allocation15], 4
      %s105 = int_to_ptr.vmem [resolvable:$true] %s104
      %110 = dma.hbm_to_vmem [thread:$0]  %s103, 2048, %s105, [#allocation14], 128, 128, 8
    $region29: #{tpu_custom_call.1} parent=1 // pred_fallthru
      _
    // Predicated region
    $region30: #{tpu_custom_call.1} parent=1 // pred_check
      _
    $region31: #{tpu_custom_call.1} parent=1 // pred_check_branch
      %112 = sbr.rel (0) target = $region33
    $region32: #{tpu_custom_call.1} parent=1 // pred_region
      %s113 = sld [smem:[#allocation3]]
      %p114 = scmp.lt.s32.totalorder %s113, 7
      %s115 = scalar_select %p114, %s113, 7
      %s116 = scalar_lea.vmem %s8, %s115
      %s117 = sld [smem:[#allocation3]]
    $region33: #{tpu_custom_call.1} parent=1 // pred_fallthru
      _
    // Predicated region
    $region34: #{tpu_custom_call.1} parent=1 // pred_check
      _
    $region35: #{tpu_custom_call.1} parent=1 // pred_check_branch
      %119 = sbr.rel (0) target = $region37
    $region36: #{tpu_custom_call.1} parent=1 // pred_region
      %121 = dma.done [#allocation5], 128
    $region37: #{tpu_custom_call.1} parent=1 // pred_fallthru
      _
    // Predicated region
    $region38: #{tpu_custom_call.1} parent=1 // pred_check
      _
    $region39: #{tpu_custom_call.1} parent=1 // pred_check_branch
      %123 = sbr.rel (0) target = $region41
    $region40: #{tpu_custom_call.1} parent=1 // pred_region
      %125 = dma.done [#allocation8], 128
    $region41: #{tpu_custom_call.1} parent=1 // pred_fallthru
      _
    // Predicated region
    $region42: #{tpu_custom_call.1} parent=1 // pred_check
      _
    $region43: #{tpu_custom_call.1} parent=1 // pred_check_branch
      %127 = sbr.rel (0) target = $region45
    $region44: #{tpu_custom_call.1} parent=1 // pred_region
      %129 = dma.done [#allocation8], 128
    $region45: #{tpu_custom_call.1} parent=1 // pred_fallthru
      _
    // Predicated region
    $region46: #{tpu_custom_call.1} parent=1 // pred_check
      _
    $region47: #{tpu_custom_call.1} parent=1 // pred_check_branch
      %131 = sbr.rel (0) target = $region49
    $region48: #{tpu_custom_call.1} parent=1 // pred_region
      %133 = dma.done [#allocation11], 8192
    $region49: #{tpu_custom_call.1} parent=1 // pred_fallthru
      _
    // Predicated region
    $region50: #{tpu_custom_call.1} parent=1 // pred_check
      _
    $region51: #{tpu_custom_call.1} parent=1 // pred_check_branch
      %135 = sbr.rel (0) target = $region53
    $region52: #{tpu_custom_call.1} parent=1 // pred_region
      %137 = dma.done [#allocation11], 8192
    $region53: #{tpu_custom_call.1} parent=1 // pred_fallthru
      _
    // Predicated region
    $region54: #{tpu_custom_call.1} parent=1 // pred_check
      _
    $region55: #{tpu_custom_call.1} parent=1 // pred_check_branch
      %139 = sbr.rel (0) target = $region57
    $region56: #{tpu_custom_call.1} parent=1 // pred_region
      %141 = dma.done [#allocation14], 64
    $region57: #{tpu_custom_call.1} parent=1 // pred_fallthru
      _
    // Predicated region
    $region58: #{tpu_custom_call.1} parent=1 // pred_check
      _
    $region59: #{tpu_custom_call.1} parent=1 // pred_check_branch
      %143 = sbr.rel (0) target = $region61
    $region60: #{tpu_custom_call.1} parent=1 // pred_region
      %145 = dma.done [#allocation14], 2048
    $region61: #{tpu_custom_call.1} parent=1 // pred_fallthru
      _
    %s146 = sld [smem:[#allocation3]]
    %p147 = scmp.lt.s32.totalorder %s146, 7
    %s148 = scalar_select %p147, %s146, 7
    %s149 = scalar_lea.vmem %s8, %s148
    %s150 = sld [smem:[#allocation3]]
    %s151 = sld [smem:[#allocation3]]
    %p152 = scmp.lt.s32.totalorder %s151, 7
    %s153 = scalar_select %p152, %s151, 7
    %s154 = scalar_lea.vmem %s8, %s153
    %s155 = sld [smem:[#allocation3]]
    %v156 = vld [vmem:[#allocation4] sm:$0xff]
    %v157 = vld [vmem:[#allocation7] sm:$0xff]
    %v158 = vld [vmem:[#allocation9] sm:$0xff]
    %v159 = vld [vmem:[#allocation10] sm:$0xff]
    %v160 = vld [vmem:[#allocation10 + $0x8] sm:$0xff]
    %v161 = vld [vmem:[#allocation10 + $0x10] sm:$0xff]
    %v162 = vld [vmem:[#allocation10 + $0x18] sm:$0xff]
    %v163 = vld [vmem:[#allocation10 + $0x20] sm:$0xff]
    %v164 = vld [vmem:[#allocation10 + $0x28] sm:$0xff]
    %v165 = vld [vmem:[#allocation10 + $0x30] sm:$0xff]
    %v166 = vld [vmem:[#allocation10 + $0x38] sm:$0xff]
    %v167 = vld [vmem:[#allocation10 + $0x40] sm:$0xff]
    %v168 = vld [vmem:[#allocation10 + $0x48] sm:$0xff]
    %v169 = vld [vmem:[#allocation10 + $0x50] sm:$0xff]
    %v170 = vld [vmem:[#allocation10 + $0x58] sm:$0xff]
    %v171 = vld [vmem:[#allocation10 + $0x60] sm:$0xff]
    %v172 = vld [vmem:[#allocation10 + $0x68] sm:$0xff]
    %v173 = vld [vmem:[#allocation10 + $0x70] sm:$0xff]
    %v174 = vld [vmem:[#allocation10 + $0x78] sm:$0xff]
    %v175 = vld [vmem:[#allocation10 + $0x80] sm:$0xff]
    %v176 = vld [vmem:[#allocation10 + $0x88] sm:$0xff]
    %v177 = vld [vmem:[#allocation10 + $0x90] sm:$0xff]
    %v178 = vld [vmem:[#allocation10 + $0x98] sm:$0xff]
    %v179 = vld [vmem:[#allocation10 + $0xa0] sm:$0xff]
    %v180 = vld [vmem:[#allocation10 + $0xa8] sm:$0xff]
    %v181 = vld [vmem:[#allocation10 + $0xb0] sm:$0xff]
    %v182 = vld [vmem:[#allocation10 + $0xb8] sm:$0xff]
    %v183 = vld [vmem:[#allocation10 + $0xc0] sm:$0xff]
    %v184 = vld [vmem:[#allocation10 + $0xc8] sm:$0xff]
    %v185 = vld [vmem:[#allocation10 + $0xd0] sm:$0xff]
    %v186 = vld [vmem:[#allocation10 + $0xd8] sm:$0xff]
    %v187 = vld [vmem:[#allocation10 + $0xe0] sm:$0xff]
    %v188 = vld [vmem:[#allocation10 + $0xe8] sm:$0xff]
    %v189 = vld [vmem:[#allocation10 + $0xf0] sm:$0xff]
    %v190 = vld [vmem:[#allocation10 + $0xf8] sm:$0xff]
    %v191 = vld [vmem:[#allocation10 + $0x100] sm:$0xff]
    %v192 = vld [vmem:[#allocation10 + $0x108] sm:$0xff]
    %v193 = vld [vmem:[#allocation10 + $0x110] sm:$0xff]
    %v194 = vld [vmem:[#allocation10 + $0x118] sm:$0xff]
    %v195 = vld [vmem:[#allocation10 + $0x120] sm:$0xff]
    %v196 = vld [vmem:[#allocation10 + $0x128] sm:$0xff]
    %v197 = vld [vmem:[#allocation10 + $0x130] sm:$0xff]
    %v198 = vld [vmem:[#allocation10 + $0x138] sm:$0xff]
    %v199 = vld [vmem:[#allocation10 + $0x140] sm:$0xff]
    %v200 = vld [vmem:[#allocation10 + $0x148] sm:$0xff]
    %v201 = vld [vmem:[#allocation10 + $0x150] sm:$0xff]
    %v202 = vld [vmem:[#allocation10 + $0x158] sm:$0xff]
    %v203 = vld [vmem:[#allocation10 + $0x160] sm:$0xff]
    %v204 = vld [vmem:[#allocation10 + $0x168] sm:$0xff]
    %v205 = vld [vmem:[#allocation10 + $0x170] sm:$0xff]
    %v206 = vld [vmem:[#allocation10 + $0x178] sm:$0xff]
    %v207 = vld [vmem:[#allocation10 + $0x180] sm:$0xff]
    %v208 = vld [vmem:[#allocation10 + $0x188] sm:$0xff]
    %v209 = vld [vmem:[#allocation10 + $0x190] sm:$0xff]
    %v210 = vld [vmem:[#allocation10 + $0x198] sm:$0xff]
    %v211 = vld [vmem:[#allocation10 + $0x1a0] sm:$0xff]
    %v212 = vld [vmem:[#allocation10 + $0x1a8] sm:$0xff]
    %v213 = vld [vmem:[#allocation10 + $0x1b0] sm:$0xff]
    %v214 = vld [vmem:[#allocation10 + $0x1b8] sm:$0xff]
    %v215 = vld [vmem:[#allocation10 + $0x1c0] sm:$0xff]
    %v216 = vld [vmem:[#allocation10 + $0x1c8] sm:$0xff]
    %v217 = vld [vmem:[#allocation10 + $0x1d0] sm:$0xff]
    %v218 = vld [vmem:[#allocation10 + $0x1d8] sm:$0xff]
    %v219 = vld [vmem:[#allocation10 + $0x1e0] sm:$0xff]
    %v220 = vld [vmem:[#allocation10 + $0x1e8] sm:$0xff]
    %v221 = vld [vmem:[#allocation10 + $0x1f0] sm:$0xff]
    %v222 = vld [vmem:[#allocation10 + $0x1f8] sm:$0xff]
    %v223 = vld [vmem:[#allocation12] sm:$0xff]
    %v224 = vld [vmem:[#allocation12 + $0x8] sm:$0xff]
    %v225 = vld [vmem:[#allocation12 + $0x10] sm:$0xff]
    %v226 = vld [vmem:[#allocation12 + $0x18] sm:$0xff]
    %v227 = vld [vmem:[#allocation12 + $0x20] sm:$0xff]
    %v228 = vld [vmem:[#allocation12 + $0x28] sm:$0xff]
    %v229 = vld [vmem:[#allocation12 + $0x30] sm:$0xff]
    %v230 = vld [vmem:[#allocation12 + $0x38] sm:$0xff]
    %v231 = vld [vmem:[#allocation12 + $0x40] sm:$0xff]
    %v232 = vld [vmem:[#allocation12 + $0x48] sm:$0xff]
    %v233 = vld [vmem:[#allocation12 + $0x50] sm:$0xff]
    %v234 = vld [vmem:[#allocation12 + $0x58] sm:$0xff]
    %v235 = vld [vmem:[#allocation12 + $0x60] sm:$0xff]
    %v236 = vld [vmem:[#allocation12 + $0x68] sm:$0xff]
    %v237 = vld [vmem:[#allocation12 + $0x70] sm:$0xff]
    %v238 = vld [vmem:[#allocation12 + $0x78] sm:$0xff]
    %v239 = vld [vmem:[#allocation12 + $0x80] sm:$0xff]
    %v240 = vld [vmem:[#allocation12 + $0x88] sm:$0xff]
    %v241 = vld [vmem:[#allocation12 + $0x90] sm:$0xff]
    %v242 = vld [vmem:[#allocation12 + $0x98] sm:$0xff]
    %v243 = vld [vmem:[#allocation12 + $0xa0] sm:$0xff]
    %v244 = vld [vmem:[#allocation12 + $0xa8] sm:$0xff]
    %v245 = vld [vmem:[#allocation12 + $0xb0] sm:$0xff]
    %v246 = vld [vmem:[#allocation12 + $0xb8] sm:$0xff]
    %v247 = vld [vmem:[#allocation12 + $0xc0] sm:$0xff]
    %v248 = vld [vmem:[#allocation12 + $0xc8] sm:$0xff]
    %v249 = vld [vmem:[#allocation12 + $0xd0] sm:$0xff]
    %v250 = vld [vmem:[#allocation12 + $0xd8] sm:$0xff]
    %v251 = vld [vmem:[#allocation12 + $0xe0] sm:$0xff]
    %v252 = vld [vmem:[#allocation12 + $0xe8] sm:$0xff]
    %v253 = vld [vmem:[#allocation12 + $0xf0] sm:$0xff]
    %v254 = vld [vmem:[#allocation12 + $0xf8] sm:$0xff]
    %v255 = vld [vmem:[#allocation12 + $0x100] sm:$0xff]
    %v256 = vld [vmem:[#allocation12 + $0x108] sm:$0xff]
    %v257 = vld [vmem:[#allocation12 + $0x110] sm:$0xff]
    %v258 = vld [vmem:[#allocation12 + $0x118] sm:$0xff]
    %v259 = vld [vmem:[#allocation12 + $0x120] sm:$0xff]
    %v260 = vld [vmem:[#allocation12 + $0x128] sm:$0xff]
    %v261 = vld [vmem:[#allocation12 + $0x130] sm:$0xff]
    %v262 = vld [vmem:[#allocation12 + $0x138] sm:$0xff]
    %v263 = vld [vmem:[#allocation12 + $0x140] sm:$0xff]
    %v264 = vld [vmem:[#allocation12 + $0x148] sm:$0xff]
    %v265 = vld [vmem:[#allocation12 + $0x150] sm:$0xff]
    %v266 = vld [vmem:[#allocation12 + $0x158] sm:$0xff]
    %v267 = vld [vmem:[#allocation12 + $0x160] sm:$0xff]
    %v268 = vld [vmem:[#allocation12 + $0x168] sm:$0xff]
    %v269 = vld [vmem:[#allocation12 + $0x170] sm:$0xff]
    %v270 = vld [vmem:[#allocation12 + $0x178] sm:$0xff]
    %v271 = vld [vmem:[#allocation12 + $0x180] sm:$0xff]
    %v272 = vld [vmem:[#allocation12 + $0x188] sm:$0xff]
    %v273 = vld [vmem:[#allocation12 + $0x190] sm:$0xff]
    %v274 = vld [vmem:[#allocation12 + $0x198] sm:$0xff]
    %v275 = vld [vmem:[#allocation12 + $0x1a0] sm:$0xff]
    %v276 = vld [vmem:[#allocation12 + $0x1a8] sm:$0xff]
    %v277 = vld [vmem:[#allocation12 + $0x1b0] sm:$0xff]
    %v278 = vld [vmem:[#allocation12 + $0x1b8] sm:$0xff]
    %v279 = vld [vmem:[#allocation12 + $0x1c0] sm:$0xff]
    %v280 = vld [vmem:[#allocation12 + $0x1c8] sm:$0xff]
    %v281 = vld [vmem:[#allocation12 + $0x1d0] sm:$0xff]
    %v282 = vld [vmem:[#allocation12 + $0x1d8] sm:$0xff]
    %v283 = vld [vmem:[#allocation12 + $0x1e0] sm:$0xff]
    %v284 = vld [vmem:[#allocation12 + $0x1e8] sm:$0xff]
    %v285 = vld [vmem:[#allocation12 + $0x1f0] sm:$0xff]
    %v286 = vld [vmem:[#allocation12 + $0x1f8] sm:$0xff]
    %v287 = vld [vmem:[#allocation13] sm:$0xf]
    %288 = vmatpush.msra.mxu0 %v283
    %289 = vmatpush.msra.mxu0 %v279
    %290 = vmatpush.msra.mxu0 %v275
    %291 = vmatpush.msra.mxu0 %v271
    %292 = vmatpush.msra.mxu0 %v267
    %293 = vmatpush.msra.mxu0 %v263
    %294 = vmatpush.msra.mxu0 %v259
    %295 = vmatpush.msra.mxu0 %v255
    %296 = vmatpush.msra.mxu0 %v251
    %297 = vmatpush.msra.mxu0 %v247
    %298 = vmatpush.msra.mxu0 %v243
    %299 = vmatpush.msra.mxu0 %v239
    %300 = vmatpush.msra.mxu0 %v235
    %301 = vmatpush.msra.mxu0 %v231
    %302 = vmatpush.msra.mxu0 %v227
    %303 = vmatpush.msra.mxu0 %v223
    %304 = vmatmul.f32.gmra.mxu0 %v157
    %v305 = vpop.f32.mrf.mxu0
    %v306 = vadd.f32 0.0, %v305
    %307 = vdwg.mxu0
    %308 = vmatpush.msra.mxu0 %v284
    %309 = vmatpush.msra.mxu0 %v280
    %310 = vmatpush.msra.mxu0 %v276
    %311 = vmatpush.msra.mxu0 %v272
    %312 = vmatpush.msra.mxu0 %v268
    %313 = vmatpush.msra.mxu0 %v264
    %314 = vmatpush.msra.mxu0 %v260
    %315 = vmatpush.msra.mxu0 %v256
    %316 = vmatpush.msra.mxu0 %v252
    %317 = vmatpush.msra.mxu0 %v248
    %318 = vmatpush.msra.mxu0 %v244
    %319 = vmatpush.msra.mxu0 %v240
    %320 = vmatpush.msra.mxu0 %v236
    %321 = vmatpush.msra.mxu0 %v232
    %322 = vmatpush.msra.mxu0 %v228
    %323 = vmatpush.msra.mxu0 %v224
    %324 = vmatmul.f32.gmra.mxu0 %v157
    %v325 = vpop.f32.mrf.mxu0
    %v326 = vadd.f32 0.0, %v325
    %327 = vdwg.mxu0
    %328 = vmatpush.msra.mxu0 %v285
    %329 = vmatpush.msra.mxu0 %v281
    %330 = vmatpush.msra.mxu0 %v277
    %331 = vmatpush.msra.mxu0 %v273
    %332 = vmatpush.msra.mxu0 %v269
    %333 = vmatpush.msra.mxu0 %v265
    %334 = vmatpush.msra.mxu0 %v261
    %335 = vmatpush.msra.mxu0 %v257
    %336 = vmatpush.msra.mxu0 %v253
    %337 = vmatpush.msra.mxu0 %v249
    %338 = vmatpush.msra.mxu0 %v245
    %339 = vmatpush.msra.mxu0 %v241
    %340 = vmatpush.msra.mxu0 %v237
    %341 = vmatpush.msra.mxu0 %v233
    %342 = vmatpush.msra.mxu0 %v229
    %343 = vmatpush.msra.mxu0 %v225
    %344 = vmatmul.f32.gmra.mxu0 %v157
    %v345 = vpop.f32.mrf.mxu0
    %v346 = vadd.f32 0.0, %v345
    %347 = vdwg.mxu0
    %348 = vmatpush.msra.mxu0 %v286
    %349 = vmatpush.msra.mxu0 %v282
    %350 = vmatpush.msra.mxu0 %v278
    %351 = vmatpush.msra.mxu0 %v274
    %352 = vmatpush.msra.mxu0 %v270
    %353 = vmatpush.msra.mxu0 %v266
    %354 = vmatpush.msra.mxu0 %v262
    %355 = vmatpush.msra.mxu0 %v258
    %356 = vmatpush.msra.mxu0 %v254
    %357 = vmatpush.msra.mxu0 %v250
    %358 = vmatpush.msra.mxu0 %v246
    %359 = vmatpush.msra.mxu0 %v242
    %360 = vmatpush.msra.mxu0 %v238
    %361 = vmatpush.msra.mxu0 %v234
    %362 = vmatpush.msra.mxu0 %v230
    %363 = vmatpush.msra.mxu0 %v226
    %364 = vmatmul.f32.gmra.mxu0 %v157
    %v365 = vpop.f32.mrf.mxu0
    %v366 = vadd.f32 0.0, %v365
    %367 = vdwg.mxu0
    %368 = vmatpush.msra.mxu0 %v219
    %369 = vmatpush.msra.mxu0 %v215
    %370 = vmatpush.msra.mxu0 %v211
    %371 = vmatpush.msra.mxu0 %v207
    %372 = vmatpush.msra.mxu0 %v203
    %373 = vmatpush.msra.mxu0 %v199
    %374 = vmatpush.msra.mxu0 %v195
    %375 = vmatpush.msra.mxu0 %v191
    %376 = vmatpush.msra.mxu0 %v187
    %377 = vmatpush.msra.mxu0 %v183
    %378 = vmatpush.msra.mxu0 %v179
    %379 = vmatpush.msra.mxu0 %v175
    %380 = vmatpush.msra.mxu0 %v171
    %381 = vmatpush.msra.mxu0 %v167
    %382 = vmatpush.msra.mxu0 %v163
    %383 = vmatpush.msra.mxu0 %v159
    %384 = vmatmul.f32.gmra.mxu0 %v156
    %v385 = vpop.f32.mrf.mxu0
    %v386 = vadd.f32 %v306, %v385
    %387 = vdwg.mxu0
    %388 = vmatpush.msra.mxu0 %v220
    %389 = vmatpush.msra.mxu0 %v216
    %390 = vmatpush.msra.mxu0 %v212
    %391 = vmatpush.msra.mxu0 %v208
    %392 = vmatpush.msra.mxu0 %v204
    %393 = vmatpush.msra.mxu0 %v200
    %394 = vmatpush.msra.mxu0 %v196
    %395 = vmatpush.msra.mxu0 %v192
    %396 = vmatpush.msra.mxu0 %v188
    %397 = vmatpush.msra.mxu0 %v184
    %398 = vmatpush.msra.mxu0 %v180
    %399 = vmatpush.msra.mxu0 %v176
    %400 = vmatpush.msra.mxu0 %v172
    %401 = vmatpush.msra.mxu0 %v168
    %402 = vmatpush.msra.mxu0 %v164
    %403 = vmatpush.msra.mxu0 %v160
    %404 = vmatmul.f32.gmra.mxu0 %v156
    %v405 = vpop.f32.mrf.mxu0
    %v406 = vadd.f32 %v326, %v405
    %407 = vdwg.mxu0
    %408 = vmatpush.msra.mxu0 %v221
    %409 = vmatpush.msra.mxu0 %v217
    %410 = vmatpush.msra.mxu0 %v213
    %411 = vmatpush.msra.mxu0 %v209
    %412 = vmatpush.msra.mxu0 %v205
    %413 = vmatpush.msra.mxu0 %v201
    %414 = vmatpush.msra.mxu0 %v197
    %415 = vmatpush.msra.mxu0 %v193
    %416 = vmatpush.msra.mxu0 %v189
    %417 = vmatpush.msra.mxu0 %v185
    %418 = vmatpush.msra.mxu0 %v181
    %419 = vmatpush.msra.mxu0 %v177
    %420 = vmatpush.msra.mxu0 %v173
    %421 = vmatpush.msra.mxu0 %v169
    %422 = vmatpush.msra.mxu0 %v165
    %423 = vmatpush.msra.mxu0 %v161
    %424 = vmatmul.f32.gmra.mxu0 %v156
    %v425 = vpop.f32.mrf.mxu0
    %v426 = vadd.f32 %v346, %v425
    %427 = vdwg.mxu0
    %428 = vmatpush.msra.mxu0 %v222
    %429 = vmatpush.msra.mxu0 %v218
    %430 = vmatpush.msra.mxu0 %v214
    %431 = vmatpush.msra.mxu0 %v210
    %432 = vmatpush.msra.mxu0 %v206
    %433 = vmatpush.msra.mxu0 %v202
    %434 = vmatpush.msra.mxu0 %v198
    %435 = vmatpush.msra.mxu0 %v194
    %436 = vmatpush.msra.mxu0 %v190
    %437 = vmatpush.msra.mxu0 %v186
    %438 = vmatpush.msra.mxu0 %v182
    %439 = vmatpush.msra.mxu0 %v178
    %440 = vmatpush.msra.mxu0 %v174
    %441 = vmatpush.msra.mxu0 %v170
    %442 = vmatpush.msra.mxu0 %v166
    %443 = vmatpush.msra.mxu0 %v162
    %444 = vmatmul.f32.gmra.mxu0 %v156
    %v445 = vpop.f32.mrf.mxu0
    %v446 = vadd.f32 %v366, %v445
    %447 = vdwg.mxu0
    %v449 = vperm.slane %v287, 0
    %v450 = vperm.slane %v287, 1
    %v451 = vperm.slane %v287, 2
    %v452 = vperm.slane %v287, 3
    %v457 = vadd.f32 %v386, %v449
    %v458 = vadd.f32 %v406, %v450
    %v459 = vadd.f32 %v426, %v451
    %v460 = vadd.f32 %v446, %v452
    %v461 = vxor.u32 %v457, 2147483648
    %v462 = vmul.f32 %v461, 1.442695
    %v463 = vpow.pop %v462
    %v464 = vadd.f32 %v463, 1.0
    %v465 = vrcp.pop %v464
    %v466 = vmul.f32 %v464, %v465
    %v467 = vsub.f32 1.0, %v466
    %v468 = vmul.f32 %v465, %v467
    %v469 = vadd.f32 %v465, %v468
    %vm470 = vweird.f32 %v464
    %vm471 = vweird.f32 %v465
    %vm472 = vmor %vm470, %vm471
    %v473 = vsel %vm472, %v465, %v469
    %v474 = vand.u32 2147483647, %v464
    %vm475 = vcmp.eq.f32.partialorder %v474, 8.507059e+37
    %v476 = vand.u32 %v464, 2147483648
    %v477 = vor.u32 1.1754944e-38, %v476
    %v478 = vsel %vm475, %v477, %v473
    %v479 = vmul.f32 1.0, %v478
    %v480 = vxor.u32 %v458, 2147483648
    %v481 = vmul.f32 %v480, 1.442695
    %v482 = vpow.pop %v481
    %v483 = vadd.f32 %v482, 1.0
    %v484 = vrcp.pop %v483
    %v485 = vmul.f32 %v483, %v484
    %v486 = vsub.f32 1.0, %v485
    %v487 = vmul.f32 %v484, %v486
    %v488 = vadd.f32 %v484, %v487
    %vm489 = vweird.f32 %v483
    %vm490 = vweird.f32 %v484
    %vm491 = vmor %vm489, %vm490
    %v492 = vsel %vm491, %v484, %v488
    %v493 = vand.u32 2147483647, %v483
    %vm494 = vcmp.eq.f32.partialorder %v493, 8.507059e+37
    %v495 = vand.u32 %v483, 2147483648
    %v496 = vor.u32 1.1754944e-38, %v495
    %v497 = vsel %vm494, %v496, %v492
    %v498 = vmul.f32 1.0, %v497
    %v499 = vtanh.pop %v459
    %v500 = vxor.u32 %v460, 2147483648
    %v501 = vmul.f32 %v500, 1.442695
    %v502 = vpow.pop %v501
    %v503 = vadd.f32 %v502, 1.0
    %v504 = vrcp.pop %v503
    %v505 = vmul.f32 %v503, %v504
    %v506 = vsub.f32 1.0, %v505
    %v507 = vmul.f32 %v504, %v506
    %v508 = vadd.f32 %v504, %v507
    %vm509 = vweird.f32 %v503
    %vm510 = vweird.f32 %v504
    %vm511 = vmor %vm509, %vm510
    %v512 = vsel %vm511, %v504, %v508
    %v513 = vand.u32 2147483647, %v503
    %vm514 = vcmp.eq.f32.partialorder %v513, 8.507059e+37
    %v515 = vand.u32 %v503, 2147483648
    %v516 = vor.u32 1.1754944e-38, %v515
    %v517 = vsel %vm514, %v516, %v512
    %v518 = vmul.f32 1.0, %v517
    %v519 = vmul.f32 %v498, %v158
    %v520 = vmul.f32 %v479, %v499
    %v521 = vadd.f32 %v519, %v520
    %v522 = vtanh.pop %v521
    %v523 = vmul.f32 %v518, %v522
    %v524 = vld [vmem:[#allocation15] sm:$0xff]
    %v525 = vld [vmem:[#allocation15 + $0x8] sm:$0xff]
    %v526 = vld [vmem:[#allocation15 + $0x10] sm:$0xff]
    %v527 = vld [vmem:[#allocation15 + $0x18] sm:$0xff]
    %v528 = vld [vmem:[#allocation15 + $0x20] sm:$0xff]
    %v529 = vld [vmem:[#allocation15 + $0x28] sm:$0xff]
    %v530 = vld [vmem:[#allocation15 + $0x30] sm:$0xff]
    %v531 = vld [vmem:[#allocation15 + $0x38] sm:$0xff]
    %v532 = vld [vmem:[#allocation15 + $0x40] sm:$0xff]
    %v533 = vld [vmem:[#allocation15 + $0x48] sm:$0xff]
    %v534 = vld [vmem:[#allocation15 + $0x50] sm:$0xff]
    %v535 = vld [vmem:[#allocation15 + $0x58] sm:$0xff]
    %v536 = vld [vmem:[#allocation15 + $0x60] sm:$0xff]
    %v537 = vld [vmem:[#allocation15 + $0x68] sm:$0xff]
    %v538 = vld [vmem:[#allocation15 + $0x70] sm:$0xff]
    %v539 = vld [vmem:[#allocation15 + $0x78] sm:$0xff]
    %v540 = vld [vmem:[%s154] sm:$0x1]
    %v542 = vperm.slane %v540, 0
    %544 = vmatpush.msra.mxu0 %v539
    %545 = vmatpush.msra.mxu0 %v538
    %546 = vmatpush.msra.mxu0 %v537
    %547 = vmatpush.msra.mxu0 %v536
    %548 = vmatpush.msra.mxu0 %v535
    %549 = vmatpush.msra.mxu0 %v534
    %550 = vmatpush.msra.mxu0 %v533
    %551 = vmatpush.msra.mxu0 %v532
    %552 = vmatpush.msra.mxu0 %v531
    %553 = vmatpush.msra.mxu0 %v530
    %554 = vmatpush.msra.mxu0 %v529
    %555 = vmatpush.msra.mxu0 %v528
    %556 = vmatpush.msra.mxu0 %v527
    %557 = vmatpush.msra.mxu0 %v526
    %558 = vmatpush.msra.mxu0 %v525
    %559 = vmatpush.msra.mxu0 %v524
    %560 = vmatmul.f32.gmra.mxu0 %v523
    %v561 = vpop.f32.mrf.mxu0
    %v562 = vadd.f32 %v542, %v561
    %563 = vdwg.mxu0
    %v564 = vtanh.pop %v562
    %v565 = vmul.f32 %v564, 2.5
    %566 = vst [vmem:[#allocation16] sm:$0xff] %v565
    %567 = vst [vmem:[#allocation17] sm:$0xff] %v523
    %568 = vst [vmem:[#allocation19] sm:$0xff] %v521
    // Predicated region
    $region62: #{tpu_custom_call.1} parent=1 // pred_check
      _
    $region63: #{tpu_custom_call.1} parent=1 // pred_check_branch
      %570 = sbr.rel (0) target = $region65
    $region64: #{tpu_custom_call.1} parent=1 // pred_region
      %572 = vsyncadd [#allocation6], 0
      %s574 = sshll.u32 [#allocation16], 4
      %s575 = int_to_ptr.vmem [resolvable:$true] %s574
      %s576 = sshll.u32 %s9, 4
      %s577 = int_to_ptr.hbm [resolvable:$true] %s576
      %579 = dma.vmem_to_hbm [thread:$0]  %s575, 128, %s577, [#allocation6]
    $region65: #{tpu_custom_call.1} parent=1 // pred_fallthru
      _
    // Predicated region
    $region66: #{tpu_custom_call.1} parent=1 // pred_check
      _
    $region67: #{tpu_custom_call.1} parent=1 // pred_check_branch
      %581 = sbr.rel (0) target = $region69
    $region68: #{tpu_custom_call.1} parent=1 // pred_region
      %583 = vsyncadd [#allocation18], 0
      %s585 = sshll.u32 [#allocation17], 4
      %s586 = int_to_ptr.vmem [resolvable:$true] %s585
      %s587 = sshll.u32 %s10, 4
      %s588 = int_to_ptr.hbm [resolvable:$true] %s587
      %590 = dma.vmem_to_hbm [thread:$0]  %s586, 128, %s588, [#allocation18]
    $region69: #{tpu_custom_call.1} parent=1 // pred_fallthru
      _
    // Predicated region
    $region70: #{tpu_custom_call.1} parent=1 // pred_check
      _
    $region71: #{tpu_custom_call.1} parent=1 // pred_check_branch
      %592 = sbr.rel (0) target = $region73
    $region72: #{tpu_custom_call.1} parent=1 // pred_region
      %594 = vsyncadd [#allocation18], 0
      %s596 = sshll.u32 [#allocation19], 4
      %s597 = int_to_ptr.vmem [resolvable:$true] %s596
      %s598 = sshll.u32 %s11, 4
      %s599 = int_to_ptr.hbm [resolvable:$true] %s598
      %601 = dma.vmem_to_hbm [thread:$0]  %s597, 128, %s599, [#allocation18]
    $region73: #{tpu_custom_call.1} parent=1 // pred_fallthru
      _
    // Predicated region
    $region74: #{tpu_custom_call.1} parent=1 // pred_check
      _
    $region75: #{tpu_custom_call.1} parent=1 // pred_check_branch
      %603 = sbr.rel (0) target = $region77
    $region76: #{tpu_custom_call.1} parent=1 // pred_region
      %605 = dma.done [#allocation6], 128
    $region77: #{tpu_custom_call.1} parent=1 // pred_fallthru
      _
    // Predicated region
    $region78: #{tpu_custom_call.1} parent=1 // pred_check
      _
    $region79: #{tpu_custom_call.1} parent=1 // pred_check_branch
      %607 = sbr.rel (0) target = $region81
    $region80: #{tpu_custom_call.1} parent=1 // pred_region
      %609 = dma.done [#allocation18], 128
    $region81: #{tpu_custom_call.1} parent=1 // pred_fallthru
      _
    // Predicated region
    $region82: #{tpu_custom_call.1} parent=1 // pred_check
      _
    $region83: #{tpu_custom_call.1} parent=1 // pred_check_branch
      %611 = sbr.rel (0) target = $region85
    $region84: #{tpu_custom_call.1} parent=1 // pred_region
      %613 = dma.done [#allocation18], 128
    $region85: #{tpu_custom_call.1} parent=1 // pred_fallthru
      _
    %614 = vsyncpa [#allocation5], 1
    %615 = vsyncpa [#allocation8], 1
    %616 = vsyncpa [#allocation11], 1
    %617 = vsyncpa [#allocation14], 1
    %618 = vsyncpa [#allocation6], 1
    %619 = vsyncpa [#allocation18], 1

</llo_original>
